<compile_context>
chip_gen: v7x
topology: tpu7x:2x2x1
jax: 0.10.0
libtpu: 0.0.40
codegen_flags: <defaults>
</compile_context>

<pallas_src>
import functools

import jax
import jax.numpy as jnp
from jax import lax
from jax.experimental import pallas as pl
from jax.experimental.pallas import tpu as pltpu

EPS = 1e-6
_LANES = 128
_SUBLANES = 8
_VMEM_LIMIT_BYTES = 32 * 1024 * 1024   # within scoped/physical VMEM on v5e/v6e/v7x
_BLOCK_BUDGET_BYTES = 8 * 1024 * 1024  # in+out blocks, double-buffered (~2 MiB/block)


def _pad_up(v, m):
    return (v + m - 1) // m * m


# ----------------------------- single-pass kernel -----------------------------
# One (BR, HW) row tile per grid step: full spatial extent on the lane axis,
# rows = flattened (n, c) pairs on sublanes.  Exactly one HBM round trip.

def _frn_rows_kernel(x_ref, tau_ref, gamma_ref, beta_ref, o_ref, *, eps, inv_hw):
    x = x_ref[...].astype(jnp.float32)                      # (BR, HW) f32 compute
    ms = jnp.sum(x * x, axis=-1, keepdims=True) * inv_hw    # lane reduce -> XLU
    scale = gamma_ref[...] * lax.rsqrt(ms + eps)            # rsqrt -> EUP; gamma folded
    y = jnp.maximum(x * scale + beta_ref[...], tau_ref[...])
    o_ref[...] = y.astype(o_ref.dtype)


# --------------------------- chunked-HW fallback kernel ------------------------
# hw grid axis has length 2*n_chunks: first phase accumulates the per-row sum of
# squares into VMEM scratch, second phase normalizes + stores chunk by chunk.

def _frn_chunked_kernel(x_ref, tau_ref, gamma_ref, beta_ref, o_ref,
                        ssq_ref, scale_ref, *, eps, inv_hw, hw, chunk, n_chunks):
    k = pl.program_id(1)

    @pl.when(k == 0)
    def _init():
        ssq_ref[...] = jnp.zeros_like(ssq_ref)

    @pl.when(k < n_chunks)                                  # accumulate phase
    def _accumulate():
        x = x_ref[...].astype(jnp.float32)                  # (BR, CHUNK)
        col = k * chunk + lax.broadcasted_iota(jnp.int32, x.shape, 1)
        xsq = jnp.where(col < hw, x * x, 0.0)               # mask padded lanes of last chunk
        ssq_ref[...] += jnp.sum(xsq, axis=-1, keepdims=True)

    @pl.when(k == n_chunks)                                 # finalize per-row scale
    def _finalize():
        ms = ssq_ref[...] * inv_hw
        scale_ref[...] = gamma_ref[...] * lax.rsqrt(ms + eps)

    @pl.when(k >= n_chunks)                                 # normalize phase
    def _normalize():
        x = x_ref[...].astype(jnp.float32)
        y = jnp.maximum(x * scale_ref[...] + beta_ref[...], tau_ref[...])
        o_ref[...] = y.astype(o_ref.dtype)


# --------------------------------- host wrapper --------------------------------

def frn(x_nchw, tau, gamma, beta, eps=EPS, *,
        block_budget_bytes=_BLOCK_BUDGET_BYTES,
        force_chunked=False, hw_chunk=None):
    """FRN forward.  x_nchw: (N, C, H, W); tau/gamma/beta: (1, C, 1, 1)."""
    n, c, h, w = x_nchw.shape
    hw = h * w
    nc = n * c
    dtype = x_nchw.dtype
    itemsize = jnp.dtype(dtype).itemsize

    x2 = x_nchw.reshape(nc, hw)                 # free view: spatial -> lanes
    # per-row params for the flattened (n, c) axis: row r <-> channel r % C
    tau_r = jnp.tile(tau.reshape(c, 1), (n, 1)).astype(jnp.float32)
    gamma_r = jnp.tile(gamma.reshape(c, 1), (n, 1)).astype(jnp.float32)
    beta_r = jnp.tile(beta.reshape(c, 1), (n, 1)).astype(jnp.float32)

    hw_pad = _pad_up(hw, _LANES)                # lane padding in VMEM
    min_rows = nc if nc < _SUBLANES else _SUBLANES
    per_row_bytes = 2 * 2 * hw_pad * itemsize   # in + out blocks, double-buffered
    rows_fit = block_budget_bytes // per_row_bytes

    if not force_chunked and rows_fit >= min_rows:
        # ------------- fast path: full-HW row blocks, one HBM round trip -------------
        if nc <= _SUBLANES:
            br = nc                                         # block = full row extent
        else:
            cap = (nc // _SUBLANES) * _SUBLANES             # largest mult of 8 <= nc
            br = min(max(_SUBLANES, (int(rows_fit) // _SUBLANES) * _SUBLANES), cap)
        out = pl.pallas_call(
            functools.partial(_frn_rows_kernel, eps=float(eps), inv_hw=1.0 / hw),
            out_shape=jax.ShapeDtypeStruct((nc, hw), dtype),
            grid=(pl.cdiv(nc, br),),
            in_specs=[
                pl.BlockSpec((br, hw), lambda i: (i, 0)),   # activation tile
                pl.BlockSpec((br, 1), lambda i: (i, 0)),    # tau
                pl.BlockSpec((br, 1), lambda i: (i, 0)),    # gamma
                pl.BlockSpec((br, 1), lambda i: (i, 0)),    # beta
            ],
            out_specs=pl.BlockSpec((br, hw), lambda i: (i, 0)),
            compiler_params=pltpu.CompilerParams(
                dimension_semantics=("parallel",),
                vmem_limit_bytes=_VMEM_LIMIT_BYTES),
        )(x2, tau_r, gamma_r, beta_r)
    else:
        # -------- fallback: HW too large for full-row blocks -> two-phase chunks ------
        br = min_rows
        if hw_chunk is None:
            chunk = (block_budget_bytes // (2 * 2 * br * itemsize)) // _LANES * _LANES
            chunk = max(_LANES, min(chunk, hw_pad))
        else:
            chunk = _pad_up(int(hw_chunk), _LANES)
        kt = pl.cdiv(hw, chunk)
        out = pl.pallas_call(
            functools.partial(_frn_chunked_kernel, eps=float(eps), inv_hw=1.0 / hw,
                              hw=hw, chunk=chunk, n_chunks=kt),
            out_shape=jax.ShapeDtypeStruct((nc, hw), dtype),
            grid=(pl.cdiv(nc, br), 2 * kt),
            in_specs=[
                pl.BlockSpec((br, chunk), lambda i, k: (i, k % kt)),
                pl.BlockSpec((br, 1), lambda i, k: (i, 0)),
                pl.BlockSpec((br, 1), lambda i, k: (i, 0)),
                pl.BlockSpec((br, 1), lambda i, k: (i, 0)),
            ],
            out_specs=pl.BlockSpec((br, chunk),
                                   lambda i, k: (i, jnp.maximum(k - kt, 0))),
            scratch_shapes=[pltpu.VMEM((br, 1), jnp.float32),   # sum of squares
                            pltpu.VMEM((br, 1), jnp.float32)],  # gamma * rsqrt scale
            compiler_params=pltpu.CompilerParams(
                dimension_semantics=("parallel", "arbitrary"),
                vmem_limit_bytes=_VMEM_LIMIT_BYTES),
        )(x2, tau_r, gamma_r, beta_r)

    return out.reshape(n, c, h, w)


# ------------------------------ pure-JAX reference -----------------------------

def frn_ref(x, tau, gamma, beta, eps=EPS):
    ms = jnp.mean(x * x, axis=(2, 3), keepdims=True)
    xn = x * lax.rsqrt(ms + eps)
    return jnp.maximum(gamma.reshape(1, -1, 1, 1) * xn
                       + beta.reshape(1, -1, 1, 1),
                       tau.reshape(1, -1, 1, 1))


# ------------------------------------- main -------------------------------------

if __name__ == "__main__":
    key = jax.random.PRNGKey(0)
    kx, ktau, kg, kb = jax.random.split(key, 4)
    n, c, h, w = 2, 4, 16, 16

    x = jax.random.normal(kx, (n, c, h, w), jnp.float32)
    # nn.Module init is tau=0, gamma=1, beta=0; use non-trivial values so the
    # affine + threshold path is actually exercised numerically.
    tau = 0.1 * jax.random.normal(ktau, (1, c, 1, 1), jnp.float32)
    gamma = 1.0 + 0.1 * jax.random.normal(kg, (1, c, 1, 1), jnp.float32)
    beta = 0.1 * jax.random.normal(kb, (1, c, 1, 1), jnp.float32)

    # 1) fast path (single-pass, full-HW row blocks), f32
    ref = frn_ref(x, tau, gamma, beta)
    out = jax.block_until_ready(frn(x, tau, gamma, beta))
    assert out.shape == x.shape, out.shape
    err = float(jnp.max(jnp.abs(out - ref)))
    assert err < 1e-4, f"single-pass max abs err {err}"

    # 2) bf16 HBM round trip (in-kernel compute stays f32)
    xq = x.astype(jnp.bfloat16)
    ref_bf = frn_ref(xq.astype(jnp.float32), tau, gamma, beta)
    out_bf = jax.block_until_ready(frn(xq, tau, gamma, beta))
    assert out_bf.dtype == jnp.bfloat16
    err_bf = float(jnp.max(jnp.abs(out_bf.astype(jnp.float32) - ref_bf)))
    assert err_bf < 3e-2, f"bf16 max abs err {err_bf}"

    # 3) chunked-HW fallback (forced; non-dividing chunk exercises lane masking)
    k2 = jax.random.split(jax.random.PRNGKey(1), 4)
    n2, c2, h2, w2 = 1, 8, 32, 32
    x2 = jax.random.normal(k2[0], (n2, c2, h2, w2), jnp.float32)
    tau2 = 0.1 * jax.random.normal(k2[1], (1, c2, 1, 1), jnp.float32)
    gamma2 = 1.0 + 0.1 * jax.random.normal(k2[2], (1, c2, 1, 1), jnp.float32)
    beta2 = 0.1 * jax.random.normal(k2[3], (1, c2, 1, 1), jnp.float32)
    ref2 = frn_ref(x2, tau2, gamma2, beta2)
    out2 = jax.block_until_ready(
        frn(x2, tau2, gamma2, beta2, force_chunked=True, hw_chunk=384))
    err2 = float(jnp.max(jnp.abs(out2 - ref2)))
    assert err2 < 1e-4, f"chunked max abs err {err2}"

    print("KERNEL_OK")
</pallas_src>

<mosaic_0001>
module attributes {stable_mosaic.version = 11 : i64} {
  func.func @_frn_rows_kernel(%arg0: i32, %arg1: memref<8x256xf32, #tpu.memory_space<vmem>>, %arg2: memref<8x1xf32, #tpu.memory_space<vmem>>, %arg3: memref<8x1xf32, #tpu.memory_space<vmem>>, %arg4: memref<8x1xf32, #tpu.memory_space<vmem>>, %arg5: memref<8x256xf32, #tpu.memory_space<vmem>>) attributes {dimension_semantics = [#tpu.dimension_semantics<parallel>], iteration_bounds = array<i64: 1>, scalar_prefetch = 0 : i64, scratch_operands = 0 : i64, tpu.core_type = #tpu.core_type<tc>, window_params = [{transform_indices = @transform_0, window_bounds = array<i64: 8, 256>}, {transform_indices = @transform_1, window_bounds = array<i64: 8, 1>}, {transform_indices = @transform_2, window_bounds = array<i64: 8, 1>}, {transform_indices = @transform_3, window_bounds = array<i64: 8, 1>}, {transform_indices = @transform_4, window_bounds = array<i64: 8, 256>}]} {
    %c0 = arith.constant 0 : index
    %c0_0 = arith.constant 0 : index
    %0 = vector.load %arg1[%c0, %c0_0] : memref<8x256xf32, #tpu.memory_space<vmem>>, vector<8x256xf32>
    %1 = arith.mulf %0, %0 : vector<8x256xf32>
    %cst = arith.constant dense<0.000000e+00> : vector<8xf32>
    %2 = vector.multi_reduction <add>, %1, %cst [1] : vector<8x256xf32> to vector<8xf32>
    %3 = vector.shape_cast %2 : vector<8xf32> to vector<8x1xf32>
    %cst_1 = arith.constant 3.906250e-03 : f32
    %4 = vector.broadcast %cst_1 : f32 to vector<8x1xf32>
    %5 = arith.mulf %3, %4 : vector<8x1xf32>
    %c0_2 = arith.constant 0 : index
    %c0_3 = arith.constant 0 : index
    %6 = vector.load %arg3[%c0_2, %c0_3] : memref<8x1xf32, #tpu.memory_space<vmem>>, vector<8x1xf32>
    %cst_4 = arith.constant 9.99999997E-7 : f32
    %7 = vector.broadcast %cst_4 : f32 to vector<8x1xf32>
    %8 = arith.addf %5, %7 : vector<8x1xf32>
    %9 = math.rsqrt %8 : vector<8x1xf32>
    %10 = arith.mulf %6, %9 : vector<8x1xf32>
    %11 = vector.broadcast %10 : vector<8x1xf32> to vector<8x256xf32>
    %12 = arith.mulf %0, %11 : vector<8x256xf32>
    %c0_5 = arith.constant 0 : index
    %c0_6 = arith.constant 0 : index
    %13 = vector.load %arg4[%c0_5, %c0_6] : memref<8x1xf32, #tpu.memory_space<vmem>>, vector<8x1xf32>
    %14 = vector.broadcast %13 : vector<8x1xf32> to vector<8x256xf32>
    %15 = arith.addf %12, %14 : vector<8x256xf32>
    %c0_7 = arith.constant 0 : index
    %c0_8 = arith.constant 0 : index
    %16 = vector.load %arg2[%c0_7, %c0_8] : memref<8x1xf32, #tpu.memory_space<vmem>>, vector<8x1xf32>
    %17 = vector.broadcast %16 : vector<8x1xf32> to vector<8x256xf32>
    %18 = arith.maximumf %15, %17 : vector<8x256xf32>
    %c0_9 = arith.constant 0 : index
    %c0_10 = arith.constant 0 : index
    %19 = vector.load %arg5[%c0_9, %c0_10] : memref<8x256xf32, #tpu.memory_space<vmem>>, vector<8x256xf32>
    tpu.vector_store %arg5[%c0_9, %c0_10], %18 {strides = array<i32>} : memref<8x256xf32, #tpu.memory_space<vmem>>, vector<8x256xf32>,
    return
  }
  func.func @transform_0(%arg0: i32) -> (i32, i32) {
    %c0_i32 = arith.constant 0 : i32
    %c0_i32_0 = arith.constant 0 : i32
    return %arg0, %c0_i32 : i32, i32
  }
  func.func @transform_1(%arg0: i32) -> (i32, i32) {
    %c0_i32 = arith.constant 0 : i32
    %c0_i32_0 = arith.constant 0 : i32
    return %arg0, %c0_i32 : i32, i32
  }
  func.func @transform_2(%arg0: i32) -> (i32, i32) {
    %c0_i32 = arith.constant 0 : i32
    %c0_i32_0 = arith.constant 0 : i32
    return %arg0, %c0_i32 : i32, i32
  }
  func.func @transform_3(%arg0: i32) -> (i32, i32) {
    %c0_i32 = arith.constant 0 : i32
    %c0_i32_0 = arith.constant 0 : i32
    return %arg0, %c0_i32 : i32, i32
  }
  func.func @transform_4(%arg0: i32) -> (i32, i32) {
    %c0_i32 = arith.constant 0 : i32
    %c0_i32_0 = arith.constant 0 : i32
    return %arg0, %c0_i32 : i32, i32
  }
}

</mosaic_0001>

<llo_original>
// kernel: tpu_custom_call.1
$region0: #{tpu_custom_call.1}
  #allocation0 [shape = 'u32[]', space=smem, size = 0x4, offset = 0x4, fixed_abs, tag = 'smem constant byte address 0x4 - core index']
  #allocation1 [shape = 'u32[144,128]{1,0:T(1,128)}', space=vmem, size = 0x12000, scoped, tag = 'internal scratch']
  %s0 = inlined_call_operand.vmem [shape: f32[8,256], index: 0, kind: input, shape index: {}]
  %s1 = inlined_call_operand.vmem [shape: f32[8,1], index: 1, kind: input, shape index: {}]
  %s2 = inlined_call_operand.vmem [shape: f32[8,1], index: 2, kind: input, shape index: {}]
  %s3 = inlined_call_operand.vmem [shape: f32[8,1], index: 3, kind: input, shape index: {}]
  %s4 = inlined_call_operand.hbm [shape: f32[8,256], index: 4, kind: output, shape index: {}]
  %s5 = sld [smem:[#allocation0]]
  $region26: #{tpu_custom_call.1} parent=0
    _
  %s7 = ssub.s32 1, %s5
  %s8 = scalar_select 0, %s7, %s5
  $region1: #{tpu_custom_call.1} parent=0
    #allocation2 [shape = 'u8[8192]{0}', space=vmem, size = 0x2000, scoped, tag = 'output window, operand 0, single buffered']
    #allocation3 [shape = 's32[1]{0}', space=sflag, size = 0x4, scoped, tag = 'scoped memory for tpu_custom_call.1']
    %9 = vsyncpa [#allocation3], 0
    // Predicated region
    $region2: #{tpu_custom_call.1} parent=1 // pred_check
      _
    $region3: #{tpu_custom_call.1} parent=1 // pred_check_branch
      %11 = sbr.rel (0) target = $region5
    $region4: #{tpu_custom_call.1} parent=1 // pred_region
      _
    $region5: #{tpu_custom_call.1} parent=1 // pred_fallthru
      _
    // Predicated region
    $region6: #{tpu_custom_call.1} parent=1 // pred_check
      _
    $region7: #{tpu_custom_call.1} parent=1 // pred_check_branch
      %13 = sbr.rel (0) target = $region9
    $region8: #{tpu_custom_call.1} parent=1 // pred_region
      _
    $region9: #{tpu_custom_call.1} parent=1 // pred_fallthru
      _
    // Predicated region
    $region10: #{tpu_custom_call.1} parent=1 // pred_check
      _
    $region11: #{tpu_custom_call.1} parent=1 // pred_check_branch
      %15 = sbr.rel (0) target = $region13
    $region12: #{tpu_custom_call.1} parent=1 // pred_region
      _
    $region13: #{tpu_custom_call.1} parent=1 // pred_fallthru
      _
    // Predicated region
    $region14: #{tpu_custom_call.1} parent=1 // pred_check
      _
    $region15: #{tpu_custom_call.1} parent=1 // pred_check_branch
      %17 = sbr.rel (0) target = $region17
    $region16: #{tpu_custom_call.1} parent=1 // pred_region
      _
    $region17: #{tpu_custom_call.1} parent=1 // pred_fallthru
      _
    %v18 = vld [vmem:[%s0] sm:$0xff]
    %v19 = vld [vmem:[%s0 + $0x8] sm:$0xff]
    %v20 = vmul.f32 %v18, %v18
    %v21 = vmul.f32 %v19, %v19
    %v22 = vadd.f32 %v20, %v21
    %23 = vadd.xlane.f32.xlu0 %v22
    %v24 = vpop.xlane.xlu0 %23
    %v25 = vmul.f32 %v24, 0.00390625
    %v26 = vld [vmem:[%s2] sm:$0xff]
    %v27 = vadd.f32 %v25, 1e-06
    %v28 = vrsqrt.pop %v27
    %v29 = vmul.f32 %v26, %v28
    %31 = vset.pattern.permute.xlu0 0
    %32 = vperm.xlu0 %31, %v29
    %v33 = vpop.permute.xlu0 %32
    %v35 = vmul.f32 %v18, %v33
    %v36 = vmul.f32 %v19, %v33
    %v37 = vld [vmem:[%s3] sm:$0xff]
    %39 = vset.pattern.permute.xlu0 0
    %40 = vperm.xlu0 %39, %v37
    %v41 = vpop.permute.xlu0 %40
    %v43 = vadd.f32 %v35, %v41
    %v44 = vadd.f32 %v36, %v41
    %v45 = vld [vmem:[%s1] sm:$0xff]
    %47 = vset.pattern.permute.xlu0 0
    %48 = vperm.xlu0 %47, %v45
    %v49 = vpop.permute.xlu0 %48
    %v51 = vmax.f32 %v43, %v49
    %v52 = vmax.f32 %v44, %v49
    %53 = vst [vmem:[#allocation2] sm:$0xff] %v51
    %54 = vst [vmem:[#allocation2 + $0x8] sm:$0xff] %v52
    // Predicated region
    $region18: #{tpu_custom_call.1} parent=1 // pred_check
      _
    $region19: #{tpu_custom_call.1} parent=1 // pred_check_branch
      %56 = sbr.rel (0) target = $region21
    $region20: #{tpu_custom_call.1} parent=1 // pred_region
      %s58 = ssub.s32 256, 256
      %59 = vsyncadd [#allocation3], %s58
      %s61 = sshll.u32 [#allocation2], 4
      %s62 = int_to_ptr.vmem [resolvable:$true] %s61
      %64 = dma.vmem_to_hbm [thread:$0]  %s62, 256, %s4, [#allocation3]
    $region21: #{tpu_custom_call.1} parent=1 // pred_fallthru
      _
    // Predicated region
    $region22: #{tpu_custom_call.1} parent=1 // pred_check
      _
    $region23: #{tpu_custom_call.1} parent=1 // pred_check_branch
      %66 = sbr.rel (0) target = $region25
    $region24: #{tpu_custom_call.1} parent=1 // pred_region
      %67 = dma.done [#allocation3], 256
    $region25: #{tpu_custom_call.1} parent=1 // pred_fallthru
      _
    %68 = vsyncpa [#allocation3], 1

</llo_original>
